<compile_context>
chip_gen: v7x
topology: tpu7x:2x2x1
jax: 0.10.0
libtpu: 0.0.40
codegen_flags: <defaults>
</compile_context>

<pallas_src>
import functools

import jax
import jax.numpy as jnp
from jax.experimental import pallas as pl
from jax.experimental.pallas import tpu as pltpu


def _q2_kernel(s_ref, a_ref, w1_ref, b_ref, w2_ref, w3_ref, o_ref, *, ds):
    # Activation streams arrive as bf16; upcast once, accumulate in f32.
    s = s_ref[...].astype(jnp.float32)          # (TB, Ds)
    a = a_ref[...].astype(jnp.float32)          # (TB, Na)
    w1 = w1_ref[...]                            # (Ds+Na, 16) f32

    # Layer 1 — torch.cat fused away: h1 = s @ W1[:Ds] + a @ W1[Ds:] + b1
    h1 = (jnp.dot(s, w1[:ds, :], preferred_element_type=jnp.float32)
          + jnp.dot(a, w1[ds:, :], preferred_element_type=jnp.float32)
          + b_ref[0:1, :])
    h1 = jnp.maximum(h1, 0.0)

    # Layer 2: (TB,16) @ (16,16) + b2 -> ReLU
    h2 = jnp.dot(h1, w2_ref[...], preferred_element_type=jnp.float32) + b_ref[1:2, :]
    h2 = jnp.maximum(h2, 0.0)

    # Layer 3: (TB,16) @ (16,1) + b3 -> (TB, 1)
    out = jnp.dot(h2, w3_ref[...], preferred_element_type=jnp.float32) + b_ref[2:3, 0:1]

    # Lane-dense store: relayout (TB,1) -> (1,1,TB) so the output block fills
    # 128-lane vregs and the writeback DMA is contiguous.
    o_ref[...] = out.reshape(1, 1, -1).astype(o_ref.dtype)


def _choose_tile_b(batch, tile_b):
    """Batch tile: multiple of 16 (bf16 sublane packing), fewest grid steps that
    fit scoped VMEM; batches >=512 rows that fit one tile are split in two so a
    v7x megacore can shard them across both TensorCores."""
    b_pad = ((max(batch, 1) + 15) // 16) * 16
    cap = max(16, (tile_b // 16) * 16)
    if b_pad <= cap:
        if b_pad >= 512:
            return (((b_pad // 2) + 15) // 16) * 16
        return b_pad
    return cap


def q2_forward(s1, a1, params, *, tile_b=8192):
    """Pallas forward pass of Q2.

    s1: (B, Nx*Ny), a1: (B, Na) -> (B, 1) float32.
    params = (w1, b_pack, w2, w3):
      w1 (Nx*Ny+Na, 16) f32, b_pack (3, 16) f32 [rows b1, b2, (b3, pad)],
      w2 (16, 16) f32, w3 (16, 1) f32.
    """
    w1, b_pack, w2, w3 = params
    B, Ds = s1.shape
    _, Na = a1.shape
    assert w1.shape[0] == Ds + Na

    # Input streams dominate HBM traffic -> feed them as bf16 (accumulation is
    # f32 in-kernel).  Best case: the producer already emits bf16 and this cast
    # is a no-op / fuses away.
    s_b = s1.astype(jnp.bfloat16)
    a_b = a1.astype(jnp.bfloat16)

    tb = _choose_tile_b(B, tile_b)
    n_blocks = pl.cdiv(B, tb)

    # VMEM footprint (lane-padded to 128, double-buffered):
    #   ~2 * (tb*128*2 [s bf16] + tb*128*2 [a bf16] + 8*tb*4 [out f32])
    #   ≈ 1.06 KiB * tb  -> ~8.5 MiB at tb=8192: fits v5e's 16 MiB scoped VMEM
    #   default and is well under v6e (32/128 MiB) and v7x (32/64 MiB).

    def resident(arr):  # same block every step -> DMA'd once, stays in VMEM
        return pl.BlockSpec(arr.shape, lambda i: (0,) * arr.ndim)

    flops = 2 * B * ((Ds + Na) * 16 + 16 * 16 + 16 * 1)
    bytes_accessed = (B * (Ds + Na) * 2                 # bf16 activation streams
                      + n_blocks * tb * 4               # f32 output slab
                      + 4 * (w1.size + b_pack.size + w2.size + w3.size))

    out = pl.pallas_call(
        functools.partial(_q2_kernel, ds=Ds),
        out_shape=jax.ShapeDtypeStruct((n_blocks, 1, tb), jnp.float32),
        grid=(n_blocks,),
        in_specs=[
            pl.BlockSpec((tb, Ds), lambda i: (i, 0)),   # s1: walks the batch axis
            pl.BlockSpec((tb, Na), lambda i: (i, 0)),   # a1: walks the batch axis
            resident(w1), resident(b_pack), resident(w2), resident(w3),
        ],
        out_specs=pl.BlockSpec((1, 1, tb), lambda i: (i, 0, 0)),
        compiler_params=pltpu.CompilerParams(
            dimension_semantics=("parallel",)),         # v7x: shard batch over 2 TCs
        cost_estimate=pl.CostEstimate(flops=flops, transcendentals=0,
                                      bytes_accessed=bytes_accessed),
    )(s_b, a_b, w1, b_pack, w2, w3)

    # (n_blocks, 1, tb) slab -> drop batch padding -> (B, 1).  Contiguous/free.
    return out.reshape(-1)[:B].reshape(B, 1)


def init_q2_params(key, nx, ny, na):
    """nn.Linear-style U(-1/sqrt(fan_in), 1/sqrt(fan_in)) init, returned in the
    kernel-ready layout: w1 (Nx*Ny+Na,16), b_pack (3,16), w2 (16,16), w3 (16,1)."""
    d_in = nx * ny + na
    dims = [(d_in, 16), (16, 16), (16, 1)]
    ws, bs = [], []
    for fi, fo in dims:
        key, kw, kb = jax.random.split(key, 3)
        bound = 1.0 / (fi ** 0.5)
        ws.append(jax.random.uniform(kw, (fi, fo), jnp.float32, -bound, bound))
        bs.append(jax.random.uniform(kb, (fo,), jnp.float32, -bound, bound))
    w1, w2, w3 = ws
    b1, b2, b3 = bs
    b_pack = jnp.zeros((3, 16), jnp.float32)
    b_pack = b_pack.at[0].set(b1).at[1].set(b2).at[2, 0].set(b3[0])
    return (w1, b_pack, w2, w3)


def q2_reference(s1, a1, params):
    """Pure-JAX reference matching the PyTorch module (explicit concat path)."""
    w1, b_pack, w2, w3 = params
    b1, b2, b3 = b_pack[0], b_pack[1], b_pack[2, :1]
    x = jnp.concatenate([s1, a1], axis=1)
    h = jnp.maximum(x @ w1 + b1, 0.0)
    h = jnp.maximum(h @ w2 + b2, 0.0)
    return h @ w3 + b3


if __name__ == "__main__":
    # Small env consistent with the module: Nx=4, Ny=4, Na=4 -> input dim 20
    Nx, Ny, Na = 4, 4, 4
    key = jax.random.PRNGKey(0)
    kp, ks, ka, ks2, ka2, ks3, ka3 = jax.random.split(key, 7)
    params = init_q2_params(kp, Nx, Ny, Na)

    def check(s1, a1, tile_b, tag):
        out = jax.block_until_ready(q2_forward(s1, a1, params, tile_b=tile_b))
        assert out.shape == (s1.shape[0], 1), f"bad shape {tag}"
        # The kernel consumes bf16-rounded activations: compare tightly against a
        # reference on the same rounded inputs, and loosely against full f32.
        s_r = s1.astype(jnp.bfloat16).astype(jnp.float32)
        a_r = a1.astype(jnp.bfloat16).astype(jnp.float32)
        ref_r = q2_reference(s_r, a_r, params)
        ref_f = q2_reference(s1, a1, params)
        assert jnp.allclose(out, ref_r, atol=1e-2, rtol=1e-2), f"mismatch vs rounded ref ({tag})"
        assert jnp.allclose(out, ref_f, atol=5e-2, rtol=5e-2), f"mismatch vs f32 ref ({tag})"

    # Case 1: tiny batch, single grid step
    B = 8
    check(jax.random.normal(ks, (B, Nx * Ny), jnp.float32),
          jax.random.normal(ka, (B, Na), jnp.float32), 8192, "B=8")

    # Case 2: larger batch -> two even tiles (v7x dual-TC path)
    B2 = 2048
    check(jax.random.normal(ks2, (B2, Nx * Ny), jnp.float32),
          jax.random.normal(ka2, (B2, Na), jnp.float32), 8192, "B=2048")

    # Case 3: ragged last tile (B not a multiple of 16, B % tb != 0)
    B3 = 1000
    check(jax.random.normal(ks3, (B3, Nx * Ny), jnp.float32),
          jax.random.normal(ka3, (B3, Na), jnp.float32), 512, "B=1000,tb=512")

    print("KERNEL_OK")
</pallas_src>

<mosaic_0001>
module attributes {stable_mosaic.version = 11 : i64} {
  func.func @_q2_kernel(%arg0: i32, %arg1: memref<16x16xbf16, #tpu.memory_space<vmem>>, %arg2: memref<16x4xbf16, #tpu.memory_space<vmem>>, %arg3: memref<20x16xf32, #tpu.memory_space<vmem>>, %arg4: memref<3x16xf32, #tpu.memory_space<vmem>>, %arg5: memref<16x16xf32, #tpu.memory_space<vmem>>, %arg6: memref<16x1xf32, #tpu.memory_space<vmem>>, %arg7: memref<1x1x16xf32, #tpu.memory_space<vmem>>) attributes {dimension_semantics = [#tpu.dimension_semantics<parallel>], iteration_bounds = array<i64: 1>, scalar_prefetch = 0 : i64, scratch_operands = 0 : i64, tpu.core_type = #tpu.core_type<tc>, window_params = [{transform_indices = @transform_0, window_bounds = array<i64: 16, 16>}, {transform_indices = @transform_1, window_bounds = array<i64: 16, 4>}, {pipeline_mode = #tpu.pipeline_mode<synchronous>, transform_indices = @transform_2, window_bounds = array<i64: 20, 16>}, {pipeline_mode = #tpu.pipeline_mode<synchronous>, transform_indices = @transform_3, window_bounds = array<i64: 3, 16>}, {pipeline_mode = #tpu.pipeline_mode<synchronous>, transform_indices = @transform_4, window_bounds = array<i64: 16, 16>}, {pipeline_mode = #tpu.pipeline_mode<synchronous>, transform_indices = @transform_5, window_bounds = array<i64: 16, 1>}, {transform_indices = @transform_6, window_bounds = array<i64: 1, 1, 16>}]} {
    %c0 = arith.constant 0 : index
    %c0_0 = arith.constant 0 : index
    %0 = vector.load %arg1[%c0, %c0_0] : memref<16x16xbf16, #tpu.memory_space<vmem>>, vector<16x16xbf16>
    %1 = arith.extf %0 : vector<16x16xbf16> to vector<16x16xf32>
    %c0_1 = arith.constant 0 : index
    %c0_2 = arith.constant 0 : index
    %2 = vector.load %arg2[%c0_1, %c0_2] : memref<16x4xbf16, #tpu.memory_space<vmem>>, vector<16x4xbf16>
    %3 = arith.extf %2 : vector<16x4xbf16> to vector<16x4xf32>
    %c0_3 = arith.constant 0 : index
    %c0_4 = arith.constant 0 : index
    %4 = vector.load %arg3[%c0_3, %c0_4] : memref<20x16xf32, #tpu.memory_space<vmem>>, vector<20x16xf32>
    %5 = vector.extract_strided_slice %4 {offsets = [0, 0], sizes = [16, 16], strides = [1, 1]} : vector<20x16xf32> to vector<16x16xf32>
    %cst = arith.constant dense<0.000000e+00> : vector<16x16xf32>
    %6 = tpu.matmul %1, %5, %cst {dimension_numbers = #tpu.dot_dimension_numbers<[1], [0], [0], [1], [0, 0, 1, 1], [], []>} : vector<16x16xf32>, vector<16x16xf32>, vector<16x16xf32> -> vector<16x16xf32>
    %7 = vector.extract_strided_slice %4 {offsets = [16, 0], sizes = [4, 16], strides = [1, 1]} : vector<20x16xf32> to vector<4x16xf32>
    %cst_5 = arith.constant dense<0.000000e+00> : vector<16x16xf32>
    %8 = tpu.matmul %3, %7, %cst_5 {dimension_numbers = #tpu.dot_dimension_numbers<[1], [0], [0], [1], [0, 0, 1, 1], [], []>} : vector<16x4xf32>, vector<4x16xf32>, vector<16x16xf32> -> vector<16x16xf32>
    %9 = arith.addf %6, %8 : vector<16x16xf32>
    %c0_6 = arith.constant 0 : index
    %c0_7 = arith.constant 0 : index
    %10 = vector.load %arg4[%c0_6, %c0_7] : memref<3x16xf32, #tpu.memory_space<vmem>>, vector<1x16xf32>
    %11 = vector.broadcast %10 : vector<1x16xf32> to vector<16x16xf32>
    %12 = arith.addf %9, %11 : vector<16x16xf32>
    %cst_8 = arith.constant 0.000000e+00 : f32
    %13 = vector.broadcast %cst_8 : f32 to vector<16x16xf32>
    %14 = arith.maximumf %12, %13 : vector<16x16xf32>
    %c0_9 = arith.constant 0 : index
    %c0_10 = arith.constant 0 : index
    %15 = vector.load %arg5[%c0_9, %c0_10] : memref<16x16xf32, #tpu.memory_space<vmem>>, vector<16x16xf32>
    %cst_11 = arith.constant dense<0.000000e+00> : vector<16x16xf32>
    %16 = tpu.matmul %14, %15, %cst_11 {dimension_numbers = #tpu.dot_dimension_numbers<[1], [0], [0], [1], [0, 0, 1, 1], [], []>} : vector<16x16xf32>, vector<16x16xf32>, vector<16x16xf32> -> vector<16x16xf32>
    %c1 = arith.constant 1 : index
    %c0_12 = arith.constant 0 : index
    %17 = vector.load %arg4[%c1, %c0_12] : memref<3x16xf32, #tpu.memory_space<vmem>>, vector<1x16xf32>
    %18 = vector.broadcast %17 : vector<1x16xf32> to vector<16x16xf32>
    %19 = arith.addf %16, %18 : vector<16x16xf32>
    %cst_13 = arith.constant 0.000000e+00 : f32
    %20 = vector.broadcast %cst_13 : f32 to vector<16x16xf32>
    %21 = arith.maximumf %19, %20 : vector<16x16xf32>
    %c0_14 = arith.constant 0 : index
    %c0_15 = arith.constant 0 : index
    %22 = vector.load %arg6[%c0_14, %c0_15] : memref<16x1xf32, #tpu.memory_space<vmem>>, vector<16x1xf32>
    %cst_16 = arith.constant dense<0.000000e+00> : vector<16x1xf32>
    %23 = tpu.matmul %21, %22, %cst_16 {dimension_numbers = #tpu.dot_dimension_numbers<[1], [0], [0], [1], [0, 0, 1, 1], [], []>} : vector<16x16xf32>, vector<16x1xf32>, vector<16x1xf32> -> vector<16x1xf32>
    %c2 = arith.constant 2 : index
    %c0_17 = arith.constant 0 : index
    %24 = vector.load %arg4[%c2, %c0_17] : memref<3x16xf32, #tpu.memory_space<vmem>>, vector<1x1xf32>
    %25 = vector.broadcast %24 : vector<1x1xf32> to vector<16x1xf32>
    %26 = arith.addf %23, %25 : vector<16x1xf32>
    %27 = vector.shape_cast %26 : vector<16x1xf32> to vector<1x1x16xf32>
    %c0_18 = arith.constant 0 : index
    %c0_19 = arith.constant 0 : index
    %c0_20 = arith.constant 0 : index
    %28 = vector.load %arg7[%c0_18, %c0_19, %c0_20] : memref<1x1x16xf32, #tpu.memory_space<vmem>>, vector<1x1x16xf32>
    tpu.vector_store %arg7[%c0_18, %c0_19, %c0_20], %27 {strides = array<i32>} : memref<1x1x16xf32, #tpu.memory_space<vmem>>, vector<1x1x16xf32>,
    return
  }
  func.func @transform_0(%arg0: i32) -> (i32, i32) {
    %c0_i32 = arith.constant 0 : i32
    %c0_i32_0 = arith.constant 0 : i32
    return %arg0, %c0_i32 : i32, i32
  }
  func.func @transform_1(%arg0: i32) -> (i32, i32) {
    %c0_i32 = arith.constant 0 : i32
    %c0_i32_0 = arith.constant 0 : i32
    return %arg0, %c0_i32 : i32, i32
  }
  func.func @transform_2(%arg0: i32) -> (i32, i32) {
    %c0_i32 = arith.constant 0 : i32
    %c0_i32_0 = arith.constant 0 : i32
    %c0_i32_1 = arith.constant 0 : i32
    return %c0_i32, %c0_i32_0 : i32, i32
  }
  func.func @transform_3(%arg0: i32) -> (i32, i32) {
    %c0_i32 = arith.constant 0 : i32
    %c0_i32_0 = arith.constant 0 : i32
    %c0_i32_1 = arith.constant 0 : i32
    return %c0_i32, %c0_i32_0 : i32, i32
  }
  func.func @transform_4(%arg0: i32) -> (i32, i32) {
    %c0_i32 = arith.constant 0 : i32
    %c0_i32_0 = arith.constant 0 : i32
    %c0_i32_1 = arith.constant 0 : i32
    return %c0_i32, %c0_i32_0 : i32, i32
  }
  func.func @transform_5(%arg0: i32) -> (i32, i32) {
    %c0_i32 = arith.constant 0 : i32
    %c0_i32_0 = arith.constant 0 : i32
    %c0_i32_1 = arith.constant 0 : i32
    return %c0_i32, %c0_i32_0 : i32, i32
  }
  func.func @transform_6(%arg0: i32) -> (i32, i32, i32) {
    %c0_i32 = arith.constant 0 : i32
    %c0_i32_0 = arith.constant 0 : i32
    %c0_i32_1 = arith.constant 0 : i32
    return %arg0, %c0_i32, %c0_i32_0 : i32, i32, i32
  }
}

</mosaic_0001>

<llo_original>
// kernel: tpu_custom_call.1
$region0: #{tpu_custom_call.1}
  #allocation0 [shape = 'u32[]', space=smem, size = 0x4, offset = 0x4, fixed_abs, tag = 'smem constant byte address 0x4 - core index']
  #allocation1 [shape = 'u32[144,128]{1,0:T(1,128)}', space=vmem, size = 0x12000, scoped, tag = 'internal scratch']
  %s0 = inlined_call_operand.vmem [shape: bf16[8,16], index: 0, kind: input, shape index: {}]
  %s1 = inlined_call_operand.vmem [shape: bf16[8,4], index: 1, kind: input, shape index: {}]
  %s2 = inlined_call_operand.vmem [shape: f32[20,16], index: 2, kind: input, shape index: {}]
  %s3 = inlined_call_operand.vmem [shape: f32[3,16], index: 3, kind: input, shape index: {}]
  %s4 = inlined_call_operand.vmem [shape: f32[16,16], index: 4, kind: input, shape index: {}]
  %s5 = inlined_call_operand.vmem [shape: f32[16,1], index: 5, kind: input, shape index: {}]
  %s6 = inlined_call_operand.hbm [shape: f32[1,1,16], index: 6, kind: output, shape index: {}]
  %s7 = sld [smem:[#allocation0]]
  $region34: #{tpu_custom_call.1} parent=0
    _
  %s9 = ssub.s32 1, %s7
  %s10 = scalar_select 0, %s9, %s7
  $region1: #{tpu_custom_call.1} parent=0
    #allocation2 [shape = 'u8[512]{0}', space=vmem, size = 0x400, scoped, tag = 'output window, operand 0, single buffered']
    #allocation3 [shape = 's32[1]{0}', space=sflag, size = 0x4, scoped, tag = 'scoped memory for tpu_custom_call.1']
    %11 = vsyncpa [#allocation3], 0
    // Predicated region
    $region2: #{tpu_custom_call.1} parent=1 // pred_check
      _
    $region3: #{tpu_custom_call.1} parent=1 // pred_check_branch
      %13 = sbr.rel (0) target = $region5
    $region4: #{tpu_custom_call.1} parent=1 // pred_region
      _
    $region5: #{tpu_custom_call.1} parent=1 // pred_fallthru
      _
    // Predicated region
    $region6: #{tpu_custom_call.1} parent=1 // pred_check
      _
    $region7: #{tpu_custom_call.1} parent=1 // pred_check_branch
      %15 = sbr.rel (0) target = $region9
    $region8: #{tpu_custom_call.1} parent=1 // pred_region
      _
    $region9: #{tpu_custom_call.1} parent=1 // pred_fallthru
      _
    // Predicated region
    $region10: #{tpu_custom_call.1} parent=1 // pred_check
      _
    $region11: #{tpu_custom_call.1} parent=1 // pred_check_branch
      %17 = sbr.rel (0) target = $region13
    $region12: #{tpu_custom_call.1} parent=1 // pred_region
      _
    $region13: #{tpu_custom_call.1} parent=1 // pred_fallthru
      _
    // Predicated region
    $region14: #{tpu_custom_call.1} parent=1 // pred_check
      _
    $region15: #{tpu_custom_call.1} parent=1 // pred_check_branch
      %19 = sbr.rel (0) target = $region17
    $region16: #{tpu_custom_call.1} parent=1 // pred_region
      _
    $region17: #{tpu_custom_call.1} parent=1 // pred_fallthru
      _
    // Predicated region
    $region18: #{tpu_custom_call.1} parent=1 // pred_check
      _
    $region19: #{tpu_custom_call.1} parent=1 // pred_check_branch
      %21 = sbr.rel (0) target = $region21
    $region20: #{tpu_custom_call.1} parent=1 // pred_region
      _
    $region21: #{tpu_custom_call.1} parent=1 // pred_fallthru
      _
    // Predicated region
    $region22: #{tpu_custom_call.1} parent=1 // pred_check
      _
    $region23: #{tpu_custom_call.1} parent=1 // pred_check_branch
      %23 = sbr.rel (0) target = $region25
    $region24: #{tpu_custom_call.1} parent=1 // pred_region
      _
    $region25: #{tpu_custom_call.1} parent=1 // pred_fallthru
      _
    %v24 = vld [vmem:[%s0] sm:$0xf]
    %v25 = vld [vmem:[%s0 + $0x4] sm:$0xf]
    %v26 = vunpack.c.l.bf16 %v24
    %v27 = vunpack.c.l.bf16 %v25
    %v28 = vld [vmem:[%s1] sm:$0xf]
    %v29 = vld [vmem:[%s1 + $0x4] sm:$0xf]
    %v30 = vunpack.c.l.bf16 %v28
    %v31 = vunpack.c.l.bf16 %v29
    %v32 = vld [vmem:[%s2] sm:$0xff]
    %v33 = vld [vmem:[%s2 + $0x8] sm:$0xff]
    %v34 = vld [vmem:[%s2 + $0x10] sm:$0xf]
    %vm35 = vcmask 31744
    %v37 = vsel %vm35, %v30, 0
    %v40 = vsel %vm35, %v31, 0
    %vm42 = vcmask 1043456
    %v44 = vsel %vm42, %v34, 0
    %46 = vmatprep.subr.mxu0 0.0
    %47 = vmatpush1.msra.mxu0 %v44
    %48 = vmatprep.subr.mxu0 0.0
    %49 = vmatpush1.msra.mxu0 0.0
    %50 = vmatprep.subr.mxu0 0.0
    %51 = vmatpush1.msra.mxu0 0.0
    %52 = vmatprep.subr.mxu0 0.0
    %53 = vmatpush1.msra.mxu0 0.0
    %54 = vmatprep.subr.mxu0 0.0
    %55 = vmatpush1.msra.mxu0 0.0
    %56 = vmatprep.subr.mxu0 0.0
    %57 = vmatpush1.msra.mxu0 0.0
    %58 = vmatprep.subr.mxu0 0.0
    %59 = vmatpush1.msra.mxu0 0.0
    %60 = vmatprep.subr.mxu0 0.0
    %61 = vmatpush1.msra.mxu0 0.0
    %62 = vmatprep.subr.mxu0 0.0
    %63 = vmatpush1.msra.mxu0 0.0
    %64 = vmatprep.subr.mxu0 0.0
    %65 = vmatpush1.msra.mxu0 0.0
    %66 = vmatprep.subr.mxu0 0.0
    %67 = vmatpush1.msra.mxu0 0.0
    %68 = vmatprep.subr.mxu0 0.0
    %69 = vmatpush1.msra.mxu0 0.0
    %70 = vmatprep.subr.mxu0 0.0
    %71 = vmatpush1.msra.mxu0 0.0
    %72 = vmatprep.subr.mxu0 0.0
    %73 = vmatpush1.msra.mxu0 0.0
    %74 = vmatprep.subr.mxu0 0.0
    %75 = vmatpush1.msra.mxu0 0.0
    %76 = vmatprep.subr.mxu0 0.0
    %77 = vmatpush1.msra.mxu0 0.0
    %78 = vmatprep.subr.mxu0 0.0
    %79 = vmatpush1.msra.mxu0 0.0
    %80 = vmatprep.subr.mxu0 0.0
    %81 = vmatpush1.msra.mxu0 0.0
    %82 = vmatprep.subr.mxu0 0.0
    %83 = vmatpush1.msra.mxu0 0.0
    %84 = vmatprep.subr.mxu0 0.0
    %85 = vmatpush1.msra.mxu0 0.0
    %86 = vmatprep.subr.mxu0 0.0
    %87 = vmatpush1.msra.mxu0 0.0
    %88 = vmatprep.subr.mxu0 0.0
    %89 = vmatpush1.msra.mxu0 0.0
    %90 = vmatprep.subr.mxu0 0.0
    %91 = vmatpush1.msra.mxu0 0.0
    %92 = vmatprep.subr.mxu0 0.0
    %93 = vmatpush1.msra.mxu0 0.0
    %94 = vmatprep.subr.mxu0 0.0
    %95 = vmatpush1.msra.mxu0 0.0
    %96 = vmatprep.subr.mxu0 0.0
    %97 = vmatpush1.msra.mxu0 0.0
    %98 = vmatprep.subr.mxu0 0.0
    %99 = vmatpush1.msra.mxu0 0.0
    %100 = vmatprep.subr.mxu0 0.0
    %101 = vmatpush1.msra.mxu0 0.0
    %102 = vmatprep.subr.mxu0 0.0
    %103 = vmatpush1.msra.mxu0 0.0
    %104 = vmatprep.subr.mxu0 0.0
    %105 = vmatpush1.msra.mxu0 0.0
    %106 = vmatprep.subr.mxu0 0.0
    %107 = vmatpush1.msra.mxu0 0.0
    %108 = vmatprep.subr.mxu0 0.0
    %109 = vmatpush1.msra.mxu0 0.0
    %110 = vmatprep.mubr.f32.mxu0 0.0
    %111 = vmatmul.mubr.f32.gmra.mrb[0].mxu0 %v37
    %v112 = vpop.f32.mrb[0].mxu0
    %v113 = vadd.f32 0.0, %v112
    %v114 = vpop.f32.mrb[0].mxu0
    %115 = vmatprep.mubr.f32.mxu0 0.0
    %116 = vmatmul.mubr.f32.gmra.mrb[0].mxu0 %v40
    %v117 = vpop.f32.mrb[0].mxu0
    %v118 = vadd.f32 0.0, %v117
    %v119 = vpop.f32.mrb[0].mxu0
    %120 = vdwg.mxu0
    %vm121 = vcmask 130048
    %v123 = vsel %vm121, %v26, 0
    %v126 = vsel %vm121, %v27, 0
    %128 = vmatprep.subr.mxu0 0.0
    %129 = vmatpush1.msra.mxu0 %v32
    %130 = vmatprep.subr.mxu0 0.0
    %131 = vmatpush1.msra.mxu0 %v33
    %132 = vmatprep.subr.mxu0 0.0
    %133 = vmatpush1.msra.mxu0 0.0
    %134 = vmatprep.subr.mxu0 0.0
    %135 = vmatpush1.msra.mxu0 0.0
    %136 = vmatprep.subr.mxu0 0.0
    %137 = vmatpush1.msra.mxu0 0.0
    %138 = vmatprep.subr.mxu0 0.0
    %139 = vmatpush1.msra.mxu0 0.0
    %140 = vmatprep.subr.mxu0 0.0
    %141 = vmatpush1.msra.mxu0 0.0
    %142 = vmatprep.subr.mxu0 0.0
    %143 = vmatpush1.msra.mxu0 0.0
    %144 = vmatprep.subr.mxu0 0.0
    %145 = vmatpush1.msra.mxu0 0.0
    %146 = vmatprep.subr.mxu0 0.0
    %147 = vmatpush1.msra.mxu0 0.0
    %148 = vmatprep.subr.mxu0 0.0
    %149 = vmatpush1.msra.mxu0 0.0
    %150 = vmatprep.subr.mxu0 0.0
    %151 = vmatpush1.msra.mxu0 0.0
    %152 = vmatprep.subr.mxu0 0.0
    %153 = vmatpush1.msra.mxu0 0.0
    %154 = vmatprep.subr.mxu0 0.0
    %155 = vmatpush1.msra.mxu0 0.0
    %156 = vmatprep.subr.mxu0 0.0
    %157 = vmatpush1.msra.mxu0 0.0
    %158 = vmatprep.subr.mxu0 0.0
    %159 = vmatpush1.msra.mxu0 0.0
    %160 = vmatprep.subr.mxu0 0.0
    %161 = vmatpush1.msra.mxu0 0.0
    %162 = vmatprep.subr.mxu0 0.0
    %163 = vmatpush1.msra.mxu0 0.0
    %164 = vmatprep.subr.mxu0 0.0
    %165 = vmatpush1.msra.mxu0 0.0
    %166 = vmatprep.subr.mxu0 0.0
    %167 = vmatpush1.msra.mxu0 0.0
    %168 = vmatprep.subr.mxu0 0.0
    %169 = vmatpush1.msra.mxu0 0.0
    %170 = vmatprep.subr.mxu0 0.0
    %171 = vmatpush1.msra.mxu0 0.0
    %172 = vmatprep.subr.mxu0 0.0
    %173 = vmatpush1.msra.mxu0 0.0
    %174 = vmatprep.subr.mxu0 0.0
    %175 = vmatpush1.msra.mxu0 0.0
    %176 = vmatprep.subr.mxu0 0.0
    %177 = vmatpush1.msra.mxu0 0.0
    %178 = vmatprep.subr.mxu0 0.0
    %179 = vmatpush1.msra.mxu0 0.0
    %180 = vmatprep.subr.mxu0 0.0
    %181 = vmatpush1.msra.mxu0 0.0
    %182 = vmatprep.subr.mxu0 0.0
    %183 = vmatpush1.msra.mxu0 0.0
    %184 = vmatprep.subr.mxu0 0.0
    %185 = vmatpush1.msra.mxu0 0.0
    %186 = vmatprep.subr.mxu0 0.0
    %187 = vmatpush1.msra.mxu0 0.0
    %188 = vmatprep.subr.mxu0 0.0
    %189 = vmatpush1.msra.mxu0 0.0
    %190 = vmatprep.subr.mxu0 0.0
    %191 = vmatpush1.msra.mxu0 0.0
    %192 = vmatprep.mubr.f32.mxu0 0.0
    %193 = vmatmul.mubr.f32.gmra.mrb[0].mxu0 %v123
    %v194 = vpop.f32.mrb[0].mxu0
    %v195 = vadd.f32 %v113, %v194
    %v196 = vpop.f32.mrb[0].mxu0
    %197 = vmatprep.mubr.f32.mxu0 0.0
    %198 = vmatmul.mubr.f32.gmra.mrb[0].mxu0 %v126
    %v199 = vpop.f32.mrb[0].mxu0
    %v200 = vadd.f32 %v118, %v199
    %v201 = vpop.f32.mrb[0].mxu0
    %202 = vdwg.mxu0
    %v203 = vld [vmem:[%s3] sm:$0x1]
    %v204 = vlaneseq
    %v205 = vshrl.u32 %v204, 7
    %v206 = vsub.s32 0, %v205
    %v207 = vrot.slane %v203, %v206
    %v208 = vadd.f32 %v195, %v207
    %v209 = vadd.f32 %v200, %v207
    %v210 = vmax.f32 %v208, 0.0
    %v211 = vmax.f32 %v209, 0.0
    %v212 = vld [vmem:[%s4] sm:$0xff]
    %v213 = vld [vmem:[%s4 + $0x8] sm:$0xff]
    %v214 = vld [vmem:[%s3 + $0x1] sm:$0x1]
    %v215 = vlaneseq
    %v216 = vshrl.u32 %v215, 7
    %v217 = vsub.s32 0, %v216
    %v218 = vrot.slane %v214, %v217
    %v220 = vsel %vm121, %v210, 0
    %v223 = vsel %vm121, %v211, 0
    %225 = vmatprep.subr.mxu0 0.0
    %226 = vmatpush1.msra.mxu0 %v212
    %227 = vmatprep.subr.mxu0 0.0
    %228 = vmatpush1.msra.mxu0 %v213
    %229 = vmatprep.subr.mxu0 0.0
    %230 = vmatpush1.msra.mxu0 0.0
    %231 = vmatprep.subr.mxu0 0.0
    %232 = vmatpush1.msra.mxu0 0.0
    %233 = vmatprep.subr.mxu0 0.0
    %234 = vmatpush1.msra.mxu0 0.0
    %235 = vmatprep.subr.mxu0 0.0
    %236 = vmatpush1.msra.mxu0 0.0
    %237 = vmatprep.subr.mxu0 0.0
    %238 = vmatpush1.msra.mxu0 0.0
    %239 = vmatprep.subr.mxu0 0.0
    %240 = vmatpush1.msra.mxu0 0.0
    %241 = vmatprep.subr.mxu0 0.0
    %242 = vmatpush1.msra.mxu0 0.0
    %243 = vmatprep.subr.mxu0 0.0
    %244 = vmatpush1.msra.mxu0 0.0
    %245 = vmatprep.subr.mxu0 0.0
    %246 = vmatpush1.msra.mxu0 0.0
    %247 = vmatprep.subr.mxu0 0.0
    %248 = vmatpush1.msra.mxu0 0.0
    %249 = vmatprep.subr.mxu0 0.0
    %250 = vmatpush1.msra.mxu0 0.0
    %251 = vmatprep.subr.mxu0 0.0
    %252 = vmatpush1.msra.mxu0 0.0
    %253 = vmatprep.subr.mxu0 0.0
    %254 = vmatpush1.msra.mxu0 0.0
    %255 = vmatprep.subr.mxu0 0.0
    %256 = vmatpush1.msra.mxu0 0.0
    %257 = vmatprep.subr.mxu0 0.0
    %258 = vmatpush1.msra.mxu0 0.0
    %259 = vmatprep.subr.mxu0 0.0
    %260 = vmatpush1.msra.mxu0 0.0
    %261 = vmatprep.subr.mxu0 0.0
    %262 = vmatpush1.msra.mxu0 0.0
    %263 = vmatprep.subr.mxu0 0.0
    %264 = vmatpush1.msra.mxu0 0.0
    %265 = vmatprep.subr.mxu0 0.0
    %266 = vmatpush1.msra.mxu0 0.0
    %267 = vmatprep.subr.mxu0 0.0
    %268 = vmatpush1.msra.mxu0 0.0
    %269 = vmatprep.subr.mxu0 0.0
    %270 = vmatpush1.msra.mxu0 0.0
    %271 = vmatprep.subr.mxu0 0.0
    %272 = vmatpush1.msra.mxu0 0.0
    %273 = vmatprep.subr.mxu0 0.0
    %274 = vmatpush1.msra.mxu0 0.0
    %275 = vmatprep.subr.mxu0 0.0
    %276 = vmatpush1.msra.mxu0 0.0
    %277 = vmatprep.subr.mxu0 0.0
    %278 = vmatpush1.msra.mxu0 0.0
    %279 = vmatprep.subr.mxu0 0.0
    %280 = vmatpush1.msra.mxu0 0.0
    %281 = vmatprep.subr.mxu0 0.0
    %282 = vmatpush1.msra.mxu0 0.0
    %283 = vmatprep.subr.mxu0 0.0
    %284 = vmatpush1.msra.mxu0 0.0
    %285 = vmatprep.subr.mxu0 0.0
    %286 = vmatpush1.msra.mxu0 0.0
    %287 = vmatprep.subr.mxu0 0.0
    %288 = vmatpush1.msra.mxu0 0.0
    %289 = vmatprep.mubr.f32.mxu0 0.0
    %290 = vmatmul.mubr.f32.gmra.mrb[0].mxu0 %v220
    %v291 = vpop.f32.mrb[0].mxu0
    %v292 = vadd.f32 %v218, %v291
    %v293 = vpop.f32.mrb[0].mxu0
    %294 = vmatprep.mubr.f32.mxu0 0.0
    %295 = vmatmul.mubr.f32.gmra.mrb[0].mxu0 %v223
    %v296 = vpop.f32.mrb[0].mxu0
    %v297 = vadd.f32 %v218, %v296
    %v298 = vpop.f32.mrb[0].mxu0
    %299 = vdwg.mxu0
    %v300 = vmax.f32 %v292, 0.0
    %v301 = vmax.f32 %v297, 0.0
    %v302 = vld [vmem:[%s5] sm:$0xff]
    %v303 = vld [vmem:[%s5 + $0x8] sm:$0xff]
    %v304 = vld [vmem:[%s3 + $0x2] sm:$0x1]
    %v305 = vlaneseq
    %v306 = vshrl.u32 %v305, 7
    %v307 = vsub.s32 0, %v306
    %v308 = vrot.slane %v304, %v307
    %v310 = vsel %vm121, %v300, 0
    %v313 = vsel %vm121, %v301, 0
    %315 = vmatprep.subr.mxu0 0.0
    %316 = vmatpush1.msra.mxu0 %v302
    %317 = vmatprep.subr.mxu0 0.0
    %318 = vmatpush1.msra.mxu0 %v303
    %319 = vmatprep.subr.mxu0 0.0
    %320 = vmatpush1.msra.mxu0 0.0
    %321 = vmatprep.subr.mxu0 0.0
    %322 = vmatpush1.msra.mxu0 0.0
    %323 = vmatprep.subr.mxu0 0.0
    %324 = vmatpush1.msra.mxu0 0.0
    %325 = vmatprep.subr.mxu0 0.0
    %326 = vmatpush1.msra.mxu0 0.0
    %327 = vmatprep.subr.mxu0 0.0
    %328 = vmatpush1.msra.mxu0 0.0
    %329 = vmatprep.subr.mxu0 0.0
    %330 = vmatpush1.msra.mxu0 0.0
    %331 = vmatprep.subr.mxu0 0.0
    %332 = vmatpush1.msra.mxu0 0.0
    %333 = vmatprep.subr.mxu0 0.0
    %334 = vmatpush1.msra.mxu0 0.0
    %335 = vmatprep.subr.mxu0 0.0
    %336 = vmatpush1.msra.mxu0 0.0
    %337 = vmatprep.subr.mxu0 0.0
    %338 = vmatpush1.msra.mxu0 0.0
    %339 = vmatprep.subr.mxu0 0.0
    %340 = vmatpush1.msra.mxu0 0.0
    %341 = vmatprep.subr.mxu0 0.0
    %342 = vmatpush1.msra.mxu0 0.0
    %343 = vmatprep.subr.mxu0 0.0
    %344 = vmatpush1.msra.mxu0 0.0
    %345 = vmatprep.subr.mxu0 0.0
    %346 = vmatpush1.msra.mxu0 0.0
    %347 = vmatprep.subr.mxu0 0.0
    %348 = vmatpush1.msra.mxu0 0.0
    %349 = vmatprep.subr.mxu0 0.0
    %350 = vmatpush1.msra.mxu0 0.0
    %351 = vmatprep.subr.mxu0 0.0
    %352 = vmatpush1.msra.mxu0 0.0
    %353 = vmatprep.subr.mxu0 0.0
    %354 = vmatpush1.msra.mxu0 0.0
    %355 = vmatprep.subr.mxu0 0.0
    %356 = vmatpush1.msra.mxu0 0.0
    %357 = vmatprep.subr.mxu0 0.0
    %358 = vmatpush1.msra.mxu0 0.0
    %359 = vmatprep.subr.mxu0 0.0
    %360 = vmatpush1.msra.mxu0 0.0
    %361 = vmatprep.subr.mxu0 0.0
    %362 = vmatpush1.msra.mxu0 0.0
    %363 = vmatprep.subr.mxu0 0.0
    %364 = vmatpush1.msra.mxu0 0.0
    %365 = vmatprep.subr.mxu0 0.0
    %366 = vmatpush1.msra.mxu0 0.0
    %367 = vmatprep.subr.mxu0 0.0
    %368 = vmatpush1.msra.mxu0 0.0
    %369 = vmatprep.subr.mxu0 0.0
    %370 = vmatpush1.msra.mxu0 0.0
    %371 = vmatprep.subr.mxu0 0.0
    %372 = vmatpush1.msra.mxu0 0.0
    %373 = vmatprep.subr.mxu0 0.0
    %374 = vmatpush1.msra.mxu0 0.0
    %375 = vmatprep.subr.mxu0 0.0
    %376 = vmatpush1.msra.mxu0 0.0
    %377 = vmatprep.subr.mxu0 0.0
    %378 = vmatpush1.msra.mxu0 0.0
    %379 = vmatprep.mubr.f32.mxu0 0.0
    %380 = vmatmul.mubr.f32.gmra.mrb[0].mxu0 %v310
    %v381 = vpop.f32.mrb[0].mxu0
    %v382 = vadd.f32 %v308, %v381
    %v383 = vpop.f32.mrb[0].mxu0
    %384 = vmatprep.mubr.f32.mxu0 0.0
    %385 = vmatmul.mubr.f32.gmra.mrb[0].mxu0 %v313
    %v386 = vpop.f32.mrb[0].mxu0
    %v387 = vadd.f32 %v308, %v386
    %v388 = vpop.f32.mrb[0].mxu0
    %389 = vdwg.mxu0
    %392 = vset.pattern.permute.xlu0 0
    %393 = vperm.xlu0 %392, %v382
    %v394 = vpop.permute.xlu0 %393
    %395 = vset.pattern.permute.xlu0 0
    %396 = vperm.xlu0 %395, %v387
    %v397 = vpop.permute.xlu0 %396
    %v398 = vlaneseq
    %v399 = vand.u32 %v398, 127
    %v400 = vlaneseq
    %v401 = vshrl.u32 %v400, 7
    %v402 = vsub.s32 %v399, %v401
    %v403 = vrot.slane %v394, %v402
    %v404 = vadd.s32 %v399, 4294967288
    %v405 = vlaneseq
    %v406 = vshrl.u32 %v405, 7
    %v407 = vsub.s32 %v404, %v406
    %v408 = vrot.slane %v397, %v407
    %vm409 = vcmask 130112
    %v410 = vsel %vm409, %v408, %v403
    %vm412 = vcmask 122880
    %413 = vst.msk [vmem:[#allocation2] sm:$0x1] %vm412, %v410
    // Predicated region
    $region26: #{tpu_custom_call.1} parent=1 // pred_check
      _
    $region27: #{tpu_custom_call.1} parent=1 // pred_check_branch
      %415 = sbr.rel (0) target = $region29
    $region28: #{tpu_custom_call.1} parent=1 // pred_region
      %s417 = ssub.s32 16, 16
      %418 = vsyncadd [#allocation3], %s417
      %s420 = sshll.u32 [#allocation2], 4
      %s421 = int_to_ptr.vmem [resolvable:$true] %s420
      %423 = dma.vmem_to_hbm [thread:$0]  %s421, 16, %s6, [#allocation3]
    $region29: #{tpu_custom_call.1} parent=1 // pred_fallthru
      _
    // Predicated region
    $region30: #{tpu_custom_call.1} parent=1 // pred_check
      _
    $region31: #{tpu_custom_call.1} parent=1 // pred_check_branch
      %425 = sbr.rel (0) target = $region33
    $region32: #{tpu_custom_call.1} parent=1 // pred_region
      %426 = dma.done [#allocation3], 16
    $region33: #{tpu_custom_call.1} parent=1 // pred_fallthru
      _
    %427 = vsyncpa [#allocation3], 1

</llo_original>
